<compile_context>
chip_gen: v6e
topology: v6e:2x2x1
jax: 0.10.0
libtpu: 0.0.40
codegen_flags: <defaults>
</compile_context>

<pallas_src>
import jax
import jax.numpy as jnp
from jax.experimental import pallas as pl
from jax.experimental.pallas import tpu as pltpu


def _round_up(x, m):
    return ((x + m - 1) // m) * m


def _make_uw_partial_kernel(B, block_b, blocks_per_slice, needs_mask):
    """Kernel producing per-slice partial sums: [sum |so-tl|, sum cos]."""
    eps2 = 1e-16  # (1e-8)^2: clamping squared norms at eps^2 == clamping norms at eps

    def kernel(so_ref, tl_ref, se_ref, te_ref, part_ref, l1_acc, cos_acc):
        p = pl.program_id(0)          # parallel slice
        j = pl.program_id(1)          # accumulation step within slice
        nj = pl.num_programs(1)

        @pl.when(j == 0)
        def _init():
            l1_acc[...] = jnp.zeros_like(l1_acc)
            cos_acc[...] = jnp.zeros_like(cos_acc)

        # L1 term: per-row sum of |student_output - true_labels| (f32 accumulate).
        so = so_ref[...].astype(jnp.float32)
        tl = tl_ref[...].astype(jnp.float32)
        l1_rows = jnp.sum(jnp.abs(so - tl), axis=1, keepdims=True)   # (block_b, 1)

        # Cosine similarity along dim=1 with eps clamp, via EUP rsqrt.
        se = se_ref[...].astype(jnp.float32)
        te = te_ref[...].astype(jnp.float32)
        dot = jnp.sum(se * te, axis=1, keepdims=True)                # (block_b, 1)
        n1sq = jnp.sum(se * se, axis=1, keepdims=True)
        n2sq = jnp.sum(te * te, axis=1, keepdims=True)
        cos = (dot
               * jax.lax.rsqrt(jnp.maximum(n1sq, eps2))
               * jax.lax.rsqrt(jnp.maximum(n2sq, eps2)))             # (block_b, 1)

        if needs_mask:
            # Mask built from the *logical* grid position, so both ragged tail
            # rows and fully-phantom blocks (clamped in the index_map) are
            # zeroed before touching the accumulators.
            row0 = (p * blocks_per_slice + j) * block_b
            rows = row0 + jax.lax.broadcasted_iota(jnp.int32, (block_b, 1), 0)
            valid = rows < B
            l1_rows = jnp.where(valid, l1_rows, 0.0)
            cos = jnp.where(valid, cos, 0.0)

        # Element-wise (VPU-only) accumulation; the cross-lane reduce happens
        # once per slice in the finalize step below.
        l1_acc[...] += l1_rows
        cos_acc[...] += cos

        @pl.when(j == nj - 1)
        def _finalize():
            part_ref[0, 0] = jnp.sum(l1_acc[...])
            part_ref[0, 1] = jnp.sum(cos_acc[...])

    return kernel


def uncertainty_weighted_loss(student_output, student_emb, teacher_emb,
                              true_labels, log_sigma1, log_sigma2,
                              block_b=None):
    B, N = student_output.shape
    B2, D = student_emb.shape
    assert B2 == B and teacher_emb.shape == (B, D) and true_labels.shape == (B, N)

    # ---- block sizing: multiple of 8 rows, conservative VMEM budget --------
    # 4 inputs x 2 pipeline buffers x block bytes must sit comfortably under
    # v5e's 16 MiB scoped default (and thus under v6e/v7x budgets too).
    if block_b is None:
        bytes_per_row_all = 4 * 2 * (N + D)          # f32 worst case, 4 arrays
        budget = 8 * 1024 * 1024                     # double-buffered working-set target
        block_b = (budget // (2 * bytes_per_row_all)) // 8 * 8
        block_b = int(max(8, min(1024, block_b)))
    block_b = int(min(_round_up(block_b, 8), _round_up(B, 8)))

    total_blocks = -(-B // block_b)
    num_parallel = 2 if total_blocks >= 2 else 1     # megacore-friendly leading axis
    blocks_per_slice = -(-total_blocks // num_parallel)

    # Ragged handling without any wrapper-side padding copies.
    has_phantom = num_parallel * blocks_per_slice != total_blocks
    needs_mask = (B % block_b != 0) or has_phantom
    last_block = total_blocks - 1

    if has_phantom:
        # Clamp so the phantom block (beyond the real data) re-reads the last
        # valid block instead of issuing an out-of-range DMA; its contribution
        # is zeroed by the in-kernel row mask.
        def row_block_map(p, j):
            return (jnp.minimum(p * blocks_per_slice + j, last_block), 0)
    else:
        def row_block_map(p, j):
            return (p * blocks_per_slice + j, 0)

    cost = pl.CostEstimate(
        flops=3 * B * N + 8 * B * D,
        transcendentals=2 * B,
        bytes_accessed=int(
            (student_output.size + true_labels.size) * student_output.dtype.itemsize
            + (student_emb.size + teacher_emb.size) * student_emb.dtype.itemsize
            + num_parallel * 2 * 4),
    )

    kernel = _make_uw_partial_kernel(B, block_b, blocks_per_slice, needs_mask)

    parts = pl.pallas_call(
        kernel,
        out_shape=jax.ShapeDtypeStruct((num_parallel, 2), jnp.float32),
        grid=(num_parallel, blocks_per_slice),
        in_specs=[
            pl.BlockSpec((block_b, N), row_block_map),   # student_output
            pl.BlockSpec((block_b, N), row_block_map),   # true_labels
            pl.BlockSpec((block_b, D), row_block_map),   # student_emb
            pl.BlockSpec((block_b, D), row_block_map),   # teacher_emb
        ],
        out_specs=pl.BlockSpec((1, 2), lambda p, j: (p, 0),
                               memory_space=pltpu.MemorySpace.SMEM),
        scratch_shapes=[pltpu.VMEM((block_b, 1), jnp.float32),
                        pltpu.VMEM((block_b, 1), jnp.float32)],
        compiler_params=pltpu.CompilerParams(
            dimension_semantics=("parallel", "arbitrary")),
        cost_estimate=cost,
    )(student_output, true_labels, student_emb, teacher_emb)

    # Final reduction + uncertainty weighting: tiny scalar math, fused by XLA.
    task_loss = jnp.sum(parts[:, 0]) / jnp.float32(B * N)
    kd_loss = 1.0 - jnp.sum(parts[:, 1]) / jnp.float32(B)

    ls1 = jnp.reshape(log_sigma1, ()).astype(jnp.float32)
    ls2 = jnp.reshape(log_sigma2, ()).astype(jnp.float32)
    sigma1 = jnp.exp(ls1)
    sigma2 = jnp.exp(ls2)
    total = (task_loss / (2.0 * sigma1 * sigma1)
             + kd_loss / (2.0 * sigma2 * sigma2)
             + ls1 + ls2)
    return total


def _reference(student_output, student_emb, teacher_emb, true_labels,
               log_sigma1, log_sigma2):
    task_loss = jnp.mean(jnp.abs(student_output - true_labels))
    eps = 1e-8
    dot = jnp.sum(student_emb * teacher_emb, axis=1)
    n1 = jnp.maximum(jnp.linalg.norm(student_emb, axis=1), eps)
    n2 = jnp.maximum(jnp.linalg.norm(teacher_emb, axis=1), eps)
    kd_loss = 1.0 - jnp.mean(dot / (n1 * n2))
    s1 = jnp.exp(log_sigma1[0])
    s2 = jnp.exp(log_sigma2[0])
    return (task_loss / (2 * s1 ** 2) + kd_loss / (2 * s2 ** 2)
            + log_sigma1[0] + log_sigma2[0])


if __name__ == "__main__":
    key = jax.random.PRNGKey(0)

    # Parameters initialized as in the module's __init__ (torch.zeros(1)).
    log_sigma1 = jnp.zeros((1,), dtype=jnp.float32)
    log_sigma2 = jnp.zeros((1,), dtype=jnp.float32)

    ok = True

    # --- Test 1: module-scale tiny shapes (single block, single slice). -----
    k1, k2, k3, k4 = jax.random.split(key, 4)
    B, N, D = 8, 16, 32
    student_output = jax.random.normal(k1, (B, N), dtype=jnp.float32)
    true_labels = jax.random.normal(k2, (B, N), dtype=jnp.float32)
    student_emb = jax.random.normal(k3, (B, D), dtype=jnp.float32)
    teacher_emb = jax.random.normal(k4, (B, D), dtype=jnp.float32)

    loss = uncertainty_weighted_loss(student_output, student_emb, teacher_emb,
                                     true_labels, log_sigma1, log_sigma2)
    loss = jax.block_until_ready(loss)
    ref = _reference(student_output, student_emb, teacher_emb, true_labels,
                     log_sigma1, log_sigma2)
    ok &= bool(jnp.allclose(loss, ref, rtol=1e-5, atol=1e-5))
    assert ok, (loss, ref)

    # --- Test 2: ragged batch + forced multi-block grid (exercises the ------
    # parallel axis, accumulation axis, boundary-block masking and the
    # phantom-block index clamp; B=20, block_b=8 -> 3 real blocks, 2x2 grid).
    k5, k6, k7, k8 = jax.random.split(jax.random.PRNGKey(1), 4)
    B2, N2, D2 = 20, 128, 256
    so2 = jax.random.normal(k5, (B2, N2), dtype=jnp.float32)
    tl2 = jax.random.normal(k6, (B2, N2), dtype=jnp.float32)
    se2 = jax.random.normal(k7, (B2, D2), dtype=jnp.float32)
    te2 = jax.random.normal(k8, (B2, D2), dtype=jnp.float32)

    loss2 = uncertainty_weighted_loss(so2, se2, te2, tl2,
                                      log_sigma1, log_sigma2, block_b=8)
    loss2 = jax.block_until_ready(loss2)
    ref2 = _reference(so2, se2, te2, tl2, log_sigma1, log_sigma2)
    ok &= bool(jnp.allclose(loss2, ref2, rtol=1e-5, atol=1e-5))
    assert ok, (loss2, ref2)

    print("KERNEL_OK")
</pallas_src>

<mosaic_0001>
module attributes {stable_mosaic.version = 11 : i64} {
  func.func @kernel(%arg0: i32, %arg1: i32, %arg2: memref<8x16xf32, #tpu.memory_space<vmem>>, %arg3: memref<8x16xf32, #tpu.memory_space<vmem>>, %arg4: memref<8x32xf32, #tpu.memory_space<vmem>>, %arg5: memref<8x32xf32, #tpu.memory_space<vmem>>, %arg6: memref<1x2xf32, #tpu.memory_space<smem>>, %arg7: memref<8x1xf32, #tpu.memory_space<vmem>>, %arg8: memref<8x1xf32, #tpu.memory_space<vmem>>) attributes {dimension_semantics = [#tpu.dimension_semantics<parallel>, #tpu.dimension_semantics<arbitrary>], iteration_bounds = array<i64: 1, 1>, scalar_prefetch = 0 : i64, scratch_operands = 2 : i64, tpu.core_type = #tpu.core_type<tc>, window_params = [{transform_indices = @transform_0, window_bounds = array<i64: 8, 16>}, {transform_indices = @transform_1, window_bounds = array<i64: 8, 16>}, {transform_indices = @transform_2, window_bounds = array<i64: 8, 32>}, {transform_indices = @transform_3, window_bounds = array<i64: 8, 32>}, {transform_indices = @transform_4, window_bounds = array<i64: 1, 2>}]} {
    %c0_i32 = arith.constant 0 : i32
    %0 = arith.cmpi eq, %arg1, %c0_i32 : i32
    %1 = arith.extui %0 : i1 to i32
    %c0_i32_0 = arith.constant 0 : i32
    %2 = arith.cmpi ne, %1, %c0_i32_0 : i32
    scf.if %2 {
      %cst_23 = arith.constant 0.000000e+00 : f32
      %37 = vector.broadcast %cst_23 : f32 to vector<8x1xf32>
      %c0_24 = arith.constant 0 : index
      %c0_25 = arith.constant 0 : index
      %38 = vector.load %arg7[%c0_24, %c0_25] : memref<8x1xf32, #tpu.memory_space<vmem>>, vector<8x1xf32>
      tpu.vector_store %arg7[%c0_24, %c0_25], %37 {strides = array<i32>} : memref<8x1xf32, #tpu.memory_space<vmem>>, vector<8x1xf32>,
      %cst_26 = arith.constant 0.000000e+00 : f32
      %39 = vector.broadcast %cst_26 : f32 to vector<8x1xf32>
      %c0_27 = arith.constant 0 : index
      %c0_28 = arith.constant 0 : index
      %40 = vector.load %arg8[%c0_27, %c0_28] : memref<8x1xf32, #tpu.memory_space<vmem>>, vector<8x1xf32>
      tpu.vector_store %arg8[%c0_27, %c0_28], %39 {strides = array<i32>} : memref<8x1xf32, #tpu.memory_space<vmem>>, vector<8x1xf32>,
    } else {
    }
    %c0 = arith.constant 0 : index
    %c0_1 = arith.constant 0 : index
    %3 = vector.load %arg2[%c0, %c0_1] : memref<8x16xf32, #tpu.memory_space<vmem>>, vector<8x16xf32>
    %c0_2 = arith.constant 0 : index
    %c0_3 = arith.constant 0 : index
    %4 = vector.load %arg3[%c0_2, %c0_3] : memref<8x16xf32, #tpu.memory_space<vmem>>, vector<8x16xf32>
    %5 = arith.subf %3, %4 : vector<8x16xf32>
    %6 = math.absf %5 : vector<8x16xf32>
    %cst = arith.constant dense<0.000000e+00> : vector<8xf32>
    %7 = vector.multi_reduction <add>, %6, %cst [1] : vector<8x16xf32> to vector<8xf32>
    %8 = vector.shape_cast %7 : vector<8xf32> to vector<8x1xf32>
    %c0_4 = arith.constant 0 : index
    %c0_5 = arith.constant 0 : index
    %9 = vector.load %arg4[%c0_4, %c0_5] : memref<8x32xf32, #tpu.memory_space<vmem>>, vector<8x32xf32>
    %c0_6 = arith.constant 0 : index
    %c0_7 = arith.constant 0 : index
    %10 = vector.load %arg5[%c0_6, %c0_7] : memref<8x32xf32, #tpu.memory_space<vmem>>, vector<8x32xf32>
    %11 = arith.mulf %9, %10 : vector<8x32xf32>
    %cst_8 = arith.constant dense<0.000000e+00> : vector<8xf32>
    %12 = vector.multi_reduction <add>, %11, %cst_8 [1] : vector<8x32xf32> to vector<8xf32>
    %13 = vector.shape_cast %12 : vector<8xf32> to vector<8x1xf32>
    %14 = arith.mulf %9, %9 : vector<8x32xf32>
    %cst_9 = arith.constant dense<0.000000e+00> : vector<8xf32>
    %15 = vector.multi_reduction <add>, %14, %cst_9 [1] : vector<8x32xf32> to vector<8xf32>
    %16 = vector.shape_cast %15 : vector<8xf32> to vector<8x1xf32>
    %17 = arith.mulf %10, %10 : vector<8x32xf32>
    %cst_10 = arith.constant dense<0.000000e+00> : vector<8xf32>
    %18 = vector.multi_reduction <add>, %17, %cst_10 [1] : vector<8x32xf32> to vector<8xf32>
    %19 = vector.shape_cast %18 : vector<8xf32> to vector<8x1xf32>
    %cst_11 = arith.constant 1.000000e-16 : f32
    %20 = vector.broadcast %cst_11 : f32 to vector<8x1xf32>
    %21 = arith.maximumf %16, %20 : vector<8x1xf32>
    %22 = math.rsqrt %21 : vector<8x1xf32>
    %23 = arith.mulf %13, %22 : vector<8x1xf32>
    %cst_12 = arith.constant 1.000000e-16 : f32
    %24 = vector.broadcast %cst_12 : f32 to vector<8x1xf32>
    %25 = arith.maximumf %19, %24 : vector<8x1xf32>
    %26 = math.rsqrt %25 : vector<8x1xf32>
    %27 = arith.mulf %23, %26 : vector<8x1xf32>
    %c0_13 = arith.constant 0 : index
    %c0_14 = arith.constant 0 : index
    %28 = vector.load %arg7[%c0_13, %c0_14] : memref<8x1xf32, #tpu.memory_space<vmem>>, vector<8x1xf32>
    %29 = arith.addf %28, %8 : vector<8x1xf32>
    %c0_15 = arith.constant 0 : index
    %c0_16 = arith.constant 0 : index
    %30 = vector.load %arg7[%c0_15, %c0_16] : memref<8x1xf32, #tpu.memory_space<vmem>>, vector<8x1xf32>
    tpu.vector_store %arg7[%c0_15, %c0_16], %29 {strides = array<i32>} : memref<8x1xf32, #tpu.memory_space<vmem>>, vector<8x1xf32>,
    %c0_17 = arith.constant 0 : index
    %c0_18 = arith.constant 0 : index
    %31 = vector.load %arg8[%c0_17, %c0_18] : memref<8x1xf32, #tpu.memory_space<vmem>>, vector<8x1xf32>
    %32 = arith.addf %31, %27 : vector<8x1xf32>
    %c0_19 = arith.constant 0 : index
    %c0_20 = arith.constant 0 : index
    %33 = vector.load %arg8[%c0_19, %c0_20] : memref<8x1xf32, #tpu.memory_space<vmem>>, vector<8x1xf32>
    tpu.vector_store %arg8[%c0_19, %c0_20], %32 {strides = array<i32>} : memref<8x1xf32, #tpu.memory_space<vmem>>, vector<8x1xf32>,
    %c0_i32_21 = arith.constant 0 : i32
    %34 = arith.cmpi eq, %arg1, %c0_i32_21 : i32
    %35 = arith.extui %34 : i1 to i32
    %c0_i32_22 = arith.constant 0 : i32
    %36 = arith.cmpi ne, %35, %c0_i32_22 : i32
    scf.if %36 {
      %c0_23 = arith.constant 0 : index
      %c0_24 = arith.constant 0 : index
      %37 = vector.load %arg7[%c0_23, %c0_24] : memref<8x1xf32, #tpu.memory_space<vmem>>, vector<8x1xf32>
      %38 = vector.shape_cast %37 : vector<8x1xf32> to vector<1x8x1xf32>
      %cst_25 = arith.constant dense<0.000000e+00> : vector<1xf32>
      %39 = vector.multi_reduction <add>, %38, %cst_25 [1, 2] : vector<1x8x1xf32> to vector<1xf32>
      %40 = vector.shape_cast %39 : vector<1xf32> to vector<1x1x1xf32>
      %41 = vector.extract %40[0, 0, 0] : f32 from vector<1x1x1xf32>
      %c0_26 = arith.constant 0 : index
      %c0_27 = arith.constant 0 : index
      %42 = memref.load %arg6[%c0_26, %c0_27] : memref<1x2xf32, #tpu.memory_space<smem>>
      memref.store %41, %arg6[%c0_26, %c0_27] : memref<1x2xf32, #tpu.memory_space<smem>>
      %c0_28 = arith.constant 0 : index
      %c0_29 = arith.constant 0 : index
      %43 = vector.load %arg8[%c0_28, %c0_29] : memref<8x1xf32, #tpu.memory_space<vmem>>, vector<8x1xf32>
      %44 = vector.shape_cast %43 : vector<8x1xf32> to vector<1x8x1xf32>
      %cst_30 = arith.constant dense<0.000000e+00> : vector<1xf32>
      %45 = vector.multi_reduction <add>, %44, %cst_30 [1, 2] : vector<1x8x1xf32> to vector<1xf32>
      %46 = vector.shape_cast %45 : vector<1xf32> to vector<1x1x1xf32>
      %47 = vector.extract %46[0, 0, 0] : f32 from vector<1x1x1xf32>
      %c0_31 = arith.constant 0 : index
      %c1 = arith.constant 1 : index
      %48 = memref.load %arg6[%c0_31, %c1] : memref<1x2xf32, #tpu.memory_space<smem>>
      memref.store %47, %arg6[%c0_31, %c1] : memref<1x2xf32, #tpu.memory_space<smem>>
    } else {
    }
    return
  }
  func.func @transform_0(%arg0: i32, %arg1: i32) -> (i32, i32) {
    %c1_i32 = arith.constant 1 : i32
    %0 = arith.muli %arg0, %c1_i32 : i32
    %1 = arith.addi %0, %arg1 : i32
    %c0_i32 = arith.constant 0 : i32
    %c0_i32_0 = arith.constant 0 : i32
    return %1, %c0_i32 : i32, i32
  }
  func.func @transform_1(%arg0: i32, %arg1: i32) -> (i32, i32) {
    %c1_i32 = arith.constant 1 : i32
    %0 = arith.muli %arg0, %c1_i32 : i32
    %1 = arith.addi %0, %arg1 : i32
    %c0_i32 = arith.constant 0 : i32
    %c0_i32_0 = arith.constant 0 : i32
    return %1, %c0_i32 : i32, i32
  }
  func.func @transform_2(%arg0: i32, %arg1: i32) -> (i32, i32) {
    %c1_i32 = arith.constant 1 : i32
    %0 = arith.muli %arg0, %c1_i32 : i32
    %1 = arith.addi %0, %arg1 : i32
    %c0_i32 = arith.constant 0 : i32
    %c0_i32_0 = arith.constant 0 : i32
    return %1, %c0_i32 : i32, i32
  }
  func.func @transform_3(%arg0: i32, %arg1: i32) -> (i32, i32) {
    %c1_i32 = arith.constant 1 : i32
    %0 = arith.muli %arg0, %c1_i32 : i32
    %1 = arith.addi %0, %arg1 : i32
    %c0_i32 = arith.constant 0 : i32
    %c0_i32_0 = arith.constant 0 : i32
    return %1, %c0_i32 : i32, i32
  }
  func.func @transform_4(%arg0: i32, %arg1: i32) -> (i32, i32) {
    %c0_i32 = arith.constant 0 : i32
    %c0_i32_0 = arith.constant 0 : i32
    return %arg0, %c0_i32 : i32, i32
  }
}

</mosaic_0001>

<llo_original>
// kernel: tpu_custom_call.1
$region0: #{tpu_custom_call.1}
  #allocation0 [shape = 'u32[]', space=smem, size = 0x4, offset = 0x4, fixed_abs, tag = 'smem constant byte address 0x4 - core index']
  #allocation1 [shape = 'u32[144,128]{1,0:T(1,128)}', space=vmem, size = 0x12000, scoped, tag = 'internal scratch']
  #allocation2 [shape = 'f32[8,1]{1,0:T(8,128)}', space=vmem, size = 0x1000, scoped, tag = 'scratch operand']
  #allocation3 [shape = 'f32[8,1]{1,0:T(8,128)}', space=vmem, size = 0x1000, scoped, tag = 'scratch operand']
  %s0 = inlined_call_operand.hbm [shape: f32[8,16], index: 0, kind: input, shape index: {}]
  %s1 = inlined_call_operand.hbm [shape: f32[8,16], index: 1, kind: input, shape index: {}]
  %s2 = inlined_call_operand.hbm [shape: f32[8,32], index: 2, kind: input, shape index: {}]
  %s3 = inlined_call_operand.hbm [shape: f32[8,32], index: 3, kind: input, shape index: {}]
  %s4 = inlined_call_operand.hbm [shape: f32[1,2], index: 4, kind: output, shape index: {}]
  %s5 = sld [smem:[#allocation0]]
  $region50: #{tpu_custom_call.1} parent=0
    _
  %s7 = ssub.s32 1, %s5
  %s8 = scalar_select 0, %s7, %s5
  $region1: #{tpu_custom_call.1} parent=0
    #allocation4 [shape = 'u8[4096]{0}', space=vmem, size = 0x1000, scoped, tag = 'input window, operand 0, single buffered']
    #allocation5 [shape = 's32[1]{0}', space=sflag, size = 0x4, scoped, tag = 'scoped memory for tpu_custom_call.1']
    #allocation6 [shape = 's32[1]{0}', space=sflag, size = 0x4, scoped, tag = 'scoped memory for tpu_custom_call.1']
    #allocation7 [shape = 'u8[4096]{0}', space=vmem, size = 0x1000, scoped, tag = 'input window, operand 1, single buffered']
    #allocation8 [shape = 's32[1]{0}', space=sflag, size = 0x4, scoped, tag = 'scoped memory for tpu_custom_call.1']
    #allocation9 [shape = 'u8[4096]{0}', space=vmem, size = 0x1000, scoped, tag = 'input window, operand 2, single buffered']
    #allocation10 [shape = 'u8[4096]{0}', space=vmem, size = 0x1000, scoped, tag = 'input window, operand 3, single buffered']
    #allocation11 [shape = 's32[1]{0}', space=sflag, size = 0x4, scoped, tag = 'scoped memory for tpu_custom_call.1']
    #allocation12 [shape = 'u8[512]{0}', space=smem, size = 0x200, scoped, tag = 'output window, operand 0, single buffered']
    %9 = vsyncpa [#allocation5], 0
    %10 = vsyncpa [#allocation8], 0
    %11 = vsyncpa [#allocation11], 0
    %12 = vsyncpa [#allocation6], 0
    // Predicated region
    $region2: #{tpu_custom_call.1} parent=1 // pred_check
      _
    $region3: #{tpu_custom_call.1} parent=1 // pred_check_branch
      %14 = sbr.rel (0) target = $region5
    $region4: #{tpu_custom_call.1} parent=1 // pred_region
      %s15 = sadd.s32 0, 0
      %s17 = ssub.s32 128, 128
      %18 = vsyncadd [#allocation5], %s17
      %s19 = smul.addr %s15, 128
      %s20 = scalar_lea.hbm %s0, %s19
      %s22 = sshll.u32 [#allocation4], 4
      %s23 = int_to_ptr.vmem [resolvable:$true] %s22
      %25 = dma.hbm_to_vmem [thread:$0]  %s20, 128, %s23, [#allocation5]
    $region5: #{tpu_custom_call.1} parent=1 // pred_fallthru
      _
    // Predicated region
    $region6: #{tpu_custom_call.1} parent=1 // pred_check
      _
    $region7: #{tpu_custom_call.1} parent=1 // pred_check_branch
      %27 = sbr.rel (0) target = $region9
    $region8: #{tpu_custom_call.1} parent=1 // pred_region
      %s28 = sadd.s32 0, 0
      %s30 = ssub.s32 128, 128
      %31 = vsyncadd [#allocation8], %s30
      %s32 = smul.addr %s28, 128
      %s33 = scalar_lea.hbm %s1, %s32
      %s35 = sshll.u32 [#allocation7], 4
      %s36 = int_to_ptr.vmem [resolvable:$true] %s35
      %38 = dma.hbm_to_vmem [thread:$0]  %s33, 128, %s36, [#allocation8]
    $region9: #{tpu_custom_call.1} parent=1 // pred_fallthru
      _
    // Predicated region
    $region10: #{tpu_custom_call.1} parent=1 // pred_check
      _
    $region11: #{tpu_custom_call.1} parent=1 // pred_check_branch
      %40 = sbr.rel (0) target = $region13
    $region12: #{tpu_custom_call.1} parent=1 // pred_region
      %s41 = sadd.s32 0, 0
      %s43 = ssub.s32 128, 128
      %44 = vsyncadd [#allocation8], %s43
      %s45 = smul.addr %s41, 128
      %s46 = scalar_lea.hbm %s2, %s45
      %s48 = sshll.u32 [#allocation9], 4
      %s49 = int_to_ptr.vmem [resolvable:$true] %s48
      %51 = dma.hbm_to_vmem [thread:$0]  %s46, 128, %s49, [#allocation8]
    $region13: #{tpu_custom_call.1} parent=1 // pred_fallthru
      _
    // Predicated region
    $region14: #{tpu_custom_call.1} parent=1 // pred_check
      _
    $region15: #{tpu_custom_call.1} parent=1 // pred_check_branch
      %53 = sbr.rel (0) target = $region17
    $region16: #{tpu_custom_call.1} parent=1 // pred_region
      %s54 = sadd.s32 0, 0
      %s56 = ssub.s32 128, 128
      %57 = vsyncadd [#allocation11], %s56
      %s58 = smul.addr %s54, 128
      %s59 = scalar_lea.hbm %s3, %s58
      %s61 = sshll.u32 [#allocation10], 4
      %s62 = int_to_ptr.vmem [resolvable:$true] %s61
      %64 = dma.hbm_to_vmem [thread:$0]  %s59, 128, %s62, [#allocation11]
    $region17: #{tpu_custom_call.1} parent=1 // pred_fallthru
      _
    // Predicated region
    $region18: #{tpu_custom_call.1} parent=1 // pred_check
      _
    $region19: #{tpu_custom_call.1} parent=1 // pred_check_branch
      %66 = sbr.rel (0) target = $region21
    $region20: #{tpu_custom_call.1} parent=1 // pred_region
      %67 = dma.done [#allocation5], 128
    $region21: #{tpu_custom_call.1} parent=1 // pred_fallthru
      _
    // Predicated region
    $region22: #{tpu_custom_call.1} parent=1 // pred_check
      _
    $region23: #{tpu_custom_call.1} parent=1 // pred_check_branch
      %69 = sbr.rel (0) target = $region25
    $region24: #{tpu_custom_call.1} parent=1 // pred_region
      %70 = dma.done [#allocation8], 128
    $region25: #{tpu_custom_call.1} parent=1 // pred_fallthru
      _
    // Predicated region
    $region26: #{tpu_custom_call.1} parent=1 // pred_check
      _
    $region27: #{tpu_custom_call.1} parent=1 // pred_check_branch
      %72 = sbr.rel (0) target = $region29
    $region28: #{tpu_custom_call.1} parent=1 // pred_region
      %73 = dma.done [#allocation8], 128
    $region29: #{tpu_custom_call.1} parent=1 // pred_fallthru
      _
    // Predicated region
    $region30: #{tpu_custom_call.1} parent=1 // pred_check
      _
    $region31: #{tpu_custom_call.1} parent=1 // pred_check_branch
      %75 = sbr.rel (0) target = $region33
    $region32: #{tpu_custom_call.1} parent=1 // pred_region
      %76 = dma.done [#allocation11], 128
    $region33: #{tpu_custom_call.1} parent=1 // pred_fallthru
      _
    %s77 = sadd.s32 0, 0
    %s78 = sadd.s32 0, 0
    %s79 = sadd.s32 0, 0
    %s80 = sadd.s32 0, 0
    %p81 = scmp.eq.s32.totalorder 0, 0
    // Predicated region
    $region34: #{tpu_custom_call.1} parent=1 // pred_check
      %p82 = pneg %p81
    $region35: #{tpu_custom_call.1} parent=1 // pred_check_branch
      %84 = sbr.rel (%p82) target = $region37
    $region36: #{tpu_custom_call.1} parent=1 // pred_region
      %vm85 = vcmask 7168
      %86 = vst.msk [vmem:[#allocation2] sm:$0xff] %vm85, 0.0
      %87 = vst.msk [vmem:[#allocation3] sm:$0xff] %vm85, 0.0
    $region37: #{tpu_custom_call.1} parent=1 // pred_fallthru
      _
    %v88 = vld [vmem:[#allocation4] sm:$0xff]
    %v89 = vld [vmem:[#allocation7] sm:$0xff]
    %v90 = vsub.f32 %v88, %v89
    %v91 = vand.u32 2147483647, %v90
    %vm92 = vcmask 130048
    %v93 = vsel %vm92, %v91, 0.0
    %94 = vadd.xlane.f32.xlu0 %v93
    %v95 = vpop.xlane.xlu0 %94
    %v96 = vld [vmem:[#allocation9] sm:$0xff]
    %v97 = vld [vmem:[#allocation10] sm:$0xff]
    %v98 = vmul.f32 %v96, %v97
    %vm99 = vcmask 261120
    %v100 = vsel %vm99, %v98, 0.0
    %101 = vadd.xlane.f32.xlu0 %v100
    %v102 = vpop.xlane.xlu0 %101
    %v103 = vmul.f32 %v96, %v96
    %v104 = vsel %vm99, %v103, 0.0
    %105 = vadd.xlane.f32.xlu0 %v104
    %v106 = vpop.xlane.xlu0 %105
    %v107 = vmul.f32 %v97, %v97
    %v108 = vsel %vm99, %v107, 0.0
    %109 = vadd.xlane.f32.xlu0 %v108
    %v110 = vpop.xlane.xlu0 %109
    %v111 = vmax.f32 %v106, 1e-16
    %v112 = vrsqrt.pop %v111
    %v113 = vmul.f32 %v102, %v112
    %v114 = vmax.f32 %v110, 1e-16
    %v115 = vrsqrt.pop %v114
    %v116 = vmul.f32 %v113, %v115
    %v117 = vld [vmem:[#allocation2] sm:$0xff]
    %v118 = vadd.f32 %v117, %v95
    %vm119 = vcmask 7168
    %120 = vst.msk [vmem:[#allocation2] sm:$0xff] %vm119, %v118
    %v121 = vld [vmem:[#allocation3] sm:$0xff]
    %v122 = vadd.f32 %v121, %v116
    %123 = vst.msk [vmem:[#allocation3] sm:$0xff] %vm119, %v122
    // Predicated region
    $region38: #{tpu_custom_call.1} parent=1 // pred_check
      %p124 = pneg %p81
    $region39: #{tpu_custom_call.1} parent=1 // pred_check_branch
      %126 = sbr.rel (%p124) target = $region41
    $region40: #{tpu_custom_call.1} parent=1 // pred_region
      %v127 = vld [vmem:[#allocation2] sm:$0xff]
      %v128 = vsel %vm119, %v127, 0.0
      %129 = vadd.xlane.f32.xlu0 %v128
      %v130 = vpop.xlane.xlu0 %129
      %v131 = vrot.slane %v130, 4
      %v132 = vadd.f32 %v130, %v131
      %v133 = vrot.slane %v132, 2
      %v134 = vadd.f32 %v132, %v133
      %v135 = vrot.slane %v134, 1
      %v136 = vadd.f32 %v134, %v135
      %s137 = vtos %v136
      %s138 = scalar_lea.smem [#allocation12], 0
      %139 = sst [smem:[%s138]] %s137
      %v140 = vld [vmem:[#allocation3] sm:$0xff]
      %v141 = vsel %vm119, %v140, 0.0
      %142 = vadd.xlane.f32.xlu0 %v141
      %v143 = vpop.xlane.xlu0 %142
      %v144 = vrot.slane %v143, 4
      %v145 = vadd.f32 %v143, %v144
      %v146 = vrot.slane %v145, 2
      %v147 = vadd.f32 %v145, %v146
      %v148 = vrot.slane %v147, 1
      %v149 = vadd.f32 %v147, %v148
      %s150 = vtos %v149
      %s151 = scalar_lea.smem [#allocation12], 1
      %152 = sst [smem:[%s151]] %s150
    $region41: #{tpu_custom_call.1} parent=1 // pred_fallthru
      _
    // Predicated region
    $region42: #{tpu_custom_call.1} parent=1 // pred_check
      _
    $region43: #{tpu_custom_call.1} parent=1 // pred_check_branch
      %154 = sbr.rel (0) target = $region45
    $region44: #{tpu_custom_call.1} parent=1 // pred_region
      %s156 = ssub.s32 16, 16
      %157 = vsyncadd [#allocation6], %s156
      %160 = dma.smem_to_hbm [#allocation12], 16, %s4, [#allocation6]
    $region45: #{tpu_custom_call.1} parent=1 // pred_fallthru
      _
    // Predicated region
    $region46: #{tpu_custom_call.1} parent=1 // pred_check
      _
    $region47: #{tpu_custom_call.1} parent=1 // pred_check_branch
      %162 = sbr.rel (0) target = $region49
    $region48: #{tpu_custom_call.1} parent=1 // pred_region
      %163 = dma.done [#allocation6], 16
    $region49: #{tpu_custom_call.1} parent=1 // pred_fallthru
      _
    %164 = sfence
    %165 = vsyncpa [#allocation5], 1
    %166 = vsyncpa [#allocation8], 1
    %167 = vsyncpa [#allocation11], 1
    %168 = vsyncpa [#allocation6], 1

</llo_original>
